<compile_context>
chip_gen: v7x
topology: tpu7x:2x2x1
jax: 0.10.0
libtpu: 0.0.40
codegen_flags: <defaults>
</compile_context>

<pallas_src>
import functools
import math

import jax
import jax.numpy as jnp
from jax.experimental import pallas as pl
from jax.experimental.pallas import tpu as pltpu

_LN10000 = math.log(10000.0)
_TARGET_TILE_BYTES = 1 << 20      # ~1 MiB x-tile per pipeline step (~85% of HBM roofline)
_FLOOR_TILE_BYTES = 512 << 10     # don't shrink tiles below ~0.5 MiB just to add steps
_MIN_GRID_STEPS = 8               # cap tiles so big inputs get a real multi-step pipeline

# Tri-state cache: None = not tried yet, True/False = fused path lowers / does not lower.
_FUSED_OK = [None]


# ---------------------------------------------------------------------------
# Init-time parameter construction (plain JAX, runs once per module)
# ---------------------------------------------------------------------------
def _build_pe_table(d_model: int, max_len: int, dtype) -> jnp.ndarray:
    """Standard sinusoidal table, shape (max_len, 1, d_model)."""
    position = jnp.arange(max_len, dtype=jnp.float32)[:, None]
    div_term = jnp.exp(jnp.arange(0, d_model, 2, dtype=jnp.float32) * (-_LN10000 / d_model))
    angles = position * div_term
    pe = jnp.zeros((max_len, d_model), dtype=jnp.float32)
    pe = pe.at[:, 0::2].set(jnp.sin(angles))
    pe = pe.at[:, 1::2].set(jnp.cos(angles))
    return pe[:, None, :].astype(dtype)


def _sinusoid_rows(d_model: int):
    """(1, D) freq/phase rows such that pe[p, j] == sin(p * freq[j] + phase[j])."""
    half = jnp.exp(jnp.arange(0, d_model, 2, dtype=jnp.float32) * (-_LN10000 / d_model))
    freq = jnp.repeat(half, 2)[None, :]                                       # (1, D)
    phase = jnp.tile(jnp.array([0.0, math.pi / 2.0], jnp.float32), d_model // 2)[None, :]
    return freq, phase


# ---------------------------------------------------------------------------
# Tiling / VMEM helpers
# ---------------------------------------------------------------------------
def _choose_row_tile(n_rows: int, row_bytes: int, align: int) -> int:
    """Row-tile size: ~1 MiB per step, >= ~0.5 MiB, capped so big inputs get at least
    _MIN_GRID_STEPS pipeline steps, rounded to `align` rows."""
    rows_target = max(1, _TARGET_TILE_BYTES // row_bytes)
    rows_floor = max(1, _FLOOR_TILE_BYTES // row_bytes)
    rows_cap = pl.cdiv(n_rows, _MIN_GRID_STEPS)
    tr = min(rows_target, max(rows_cap, rows_floor))
    tr = max(align, (tr // align) * align)
    return min(tr, n_rows)


@functools.lru_cache(maxsize=1)
def _vmem_limit_bytes() -> int:
    """Per-generation scoped-VMEM limit: <= 3/4 of physical (v7x: 48 of 64 MiB), capped
    at 64 MiB (v5e/v6e have 128 MiB physical)."""
    try:
        cap = int(getattr(pltpu.get_tpu_info(), "vmem_capacity_bytes", 0) or 0)
    except Exception:
        cap = 0
    if cap <= 0:
        return 32 * 1024 * 1024  # conservative default if the query is unavailable
    return min(3 * cap // 4, 64 * 1024 * 1024)


# ---------------------------------------------------------------------------
# Kernels
# ---------------------------------------------------------------------------
def _pe_fused_kernel(x_ref, freq_ref, phase_ref, o_ref, *, batch: int, pos_per_tile: int):
    # x_ref / o_ref: (rows, D) tile of the row-flattened (S*B, D) tensor.
    rows, d = x_ref.shape
    l = jax.lax.broadcasted_iota(jnp.int32, (rows, d), 0)  # local row index in this tile
    # position = global_row // batch.  Tiles start on whole positions (rows % batch == 0),
    # so this is  program_id * pos_per_tile  +  local_row // batch.  The in-tile division
    # uses a float reciprocal with a +0.5 midpoint; it is exact because
    # (rows / batch) * 2^-23 << 0.5 / batch whenever rows << 4e6 (tiles are far smaller).
    pos_in_tile = ((l.astype(jnp.float32) + 0.5) * (1.0 / batch)).astype(jnp.int32)
    pos = (pos_in_tile + pl.program_id(0) * pos_per_tile).astype(jnp.float32)
    angle = pos * freq_ref[...] + phase_ref[...]            # (rows, D) * (1, D) + (1, D)
    o_ref[...] = x_ref[...] + jnp.sin(angle).astype(o_ref.dtype)


def _pe_streamed_kernel(x_ref, pe_ref, o_ref):
    # x_ref: (ts, B, D), pe_ref: (ts, 1, D) -> broadcast add over the batch axis.
    o_ref[...] = x_ref[...] + pe_ref[...]


# ---------------------------------------------------------------------------
# pallas_call wrappers
# ---------------------------------------------------------------------------
def _positional_encoding_fused(x, freq=None, phase=None, *, donate: bool = False):
    """out = x + pe[:S] with the PE generated in-kernel; x viewed as (S*B, D) rows."""
    S, B, D = x.shape
    if freq is None or phase is None:
        freq, phase = _sinusoid_rows(D)
    itemsize = jnp.dtype(x.dtype).itemsize
    n_rows = S * B
    align = math.lcm(8, B)                # sublane multiple AND whole sequence positions
    tr = _choose_row_tile(n_rows, D * itemsize, align)
    grid = (pl.cdiv(n_rows, tr),)
    kernel = functools.partial(_pe_fused_kernel, batch=B, pos_per_tile=tr // B)

    x_rows = x.reshape(n_rows, D)         # row-major view, no data movement
    out_rows = pl.pallas_call(
        kernel,
        out_shape=jax.ShapeDtypeStruct((n_rows, D), x.dtype),
        grid=grid,
        in_specs=[
            pl.BlockSpec((tr, D), lambda i: (i, 0)),   # x rows: streamed, double-buffered
            pl.BlockSpec((1, D), lambda i: (0, 0)),    # freq row: resident
            pl.BlockSpec((1, D), lambda i: (0, 0)),    # phase row: resident
        ],
        out_specs=pl.BlockSpec((tr, D), lambda i: (i, 0)),
        compiler_params=pltpu.CompilerParams(
            dimension_semantics=("parallel",),
            vmem_limit_bytes=_vmem_limit_bytes(),
        ),
        cost_estimate=pl.CostEstimate(
            flops=4 * n_rows * D,
            transcendentals=n_rows * D,
            bytes_accessed=2 * n_rows * D * itemsize + 8 * D,
        ),
        input_output_aliases={0: 0} if donate else {},
    )(x_rows, freq, phase)
    return out_rows.reshape(S, B, D)


def _positional_encoding_streamed(x, pe_table, *, donate: bool = False):
    """out = x + pe[:S], streaming (ts,1,D) pe tiles next to (ts,B,D) x tiles."""
    S, B, D = x.shape
    itemsize = jnp.dtype(x.dtype).itemsize
    if pe_table.dtype != x.dtype:          # avoided on the hot path: the table is already
        pe_table = pe_table.astype(x.dtype)  # built in the model dtype at module init
    ts = _choose_row_tile(S, B * D * itemsize, 1)  # leading dim: no sublane alignment
    grid = (pl.cdiv(S, ts),)
    return pl.pallas_call(
        _pe_streamed_kernel,
        out_shape=jax.ShapeDtypeStruct((S, B, D), x.dtype),
        grid=grid,
        in_specs=[
            pl.BlockSpec((ts, B, D), lambda i: (i, 0, 0)),
            pl.BlockSpec((ts, 1, D), lambda i: (i, 0, 0)),  # only pe[:S] is ever fetched
        ],
        out_specs=pl.BlockSpec((ts, B, D), lambda i: (i, 0, 0)),
        compiler_params=pltpu.CompilerParams(
            dimension_semantics=("parallel",),
            vmem_limit_bytes=_vmem_limit_bytes(),
        ),
        cost_estimate=pl.CostEstimate(
            flops=S * B * D,
            transcendentals=0,
            bytes_accessed=(2 * B + 1) * S * D * itemsize,
        ),
        input_output_aliases={0: 0} if donate else {},
    )(x, pe_table)


# ---------------------------------------------------------------------------
# Module-like wrapper (mirrors the PyTorch nn.Module)
# ---------------------------------------------------------------------------
class PositionalEncoding:
    """Pallas-TPU equivalent of the PyTorch sinusoidal PositionalEncoding (dropout p=0)."""

    def __init__(self, d_model: int, dropout: float = 0.0, max_len: int = 30,
                 dtype=jnp.float32):
        if d_model % 2 != 0:
            raise ValueError("d_model must be even (sin/cos interleave needs pairs).")
        if dropout != 0.0:
            # TODO(synk): stochastic dropout (p > 0) not implemented.
            raise NotImplementedError("Only dropout p=0.0 (identity) is implemented.")
        self.d_model = d_model
        self.max_len = max_len
        self.dtype = dtype
        # Built once at init, already in the model dtype (no per-call slice/cast).
        self.pe = _build_pe_table(d_model, max_len, dtype)       # (max_len, 1, d_model)
        self._freq, self._phase = _sinusoid_rows(d_model)        # (1, d_model) each

    def __call__(self, x: jnp.ndarray, *, donate: bool = False) -> jnp.ndarray:
        S, B, D = x.shape
        if D != self.d_model:
            raise ValueError(f"last dim {D} != d_model {self.d_model}")
        if S > self.max_len:
            raise ValueError(f"seq_len {S} exceeds max_len {self.max_len}")
        itemsize = jnp.dtype(x.dtype).itemsize
        # Fused path is worth it when the alignment unit (lcm(8, B) rows) still fits in a
        # ~1 MiB tile; otherwise B is already sublane-dense and the streamed-pe path is at
        # the HBM roofline anyway.
        min_aligned_tile = math.lcm(8, B) * D * itemsize
        if min_aligned_tile <= _TARGET_TILE_BYTES and _FUSED_OK[0] is not False:
            try:
                out = _positional_encoding_fused(x, self._freq, self._phase, donate=donate)
                _FUSED_OK[0] = True
                return out
            except Exception:
                # In-kernel sin (or another fused-path op) did not lower on this backend:
                # permanently fall back to the streamed-pe kernel.
                _FUSED_OK[0] = False
        return _positional_encoding_streamed(x, self.pe, donate=donate)


if __name__ == "__main__":
    # Shapes implied by the module: (seq_len, batch, d_model) with the spec defaults.
    d_model, max_len, seq_len, batch = 32, 30, 8, 2
    key = jax.random.PRNGKey(0)
    x = jax.random.normal(key, (seq_len, batch, d_model), dtype=jnp.float32)

    module = PositionalEncoding(d_model, dropout=0.0, max_len=max_len)
    out = jax.block_until_ready(module(x))
    ref = x + module.pe[:seq_len]
    assert out.shape == x.shape and out.dtype == x.dtype
    assert jnp.allclose(out, ref, atol=1e-4, rtol=1e-4), "mismatch vs reference (small)"

    # Second check: large enough to exercise the multi-step pipelined grid and the
    # cross-tile position arithmetic (including a partial boundary tile).
    d2, s2, b2 = 128, 300, 4
    module2 = PositionalEncoding(d2, dropout=0.0, max_len=512)
    x2 = jax.random.normal(jax.random.PRNGKey(1), (s2, b2, d2), dtype=jnp.float32)
    out2 = jax.block_until_ready(module2(x2))
    ref2 = x2 + module2.pe[:s2]
    assert jnp.allclose(out2, ref2, atol=1e-4, rtol=1e-4), "mismatch vs reference (large)"

    print("KERNEL_OK")
</pallas_src>

<mosaic_0001>
module attributes {stable_mosaic.version = 11 : i64} {
  func.func @_pe_fused_kernel(%arg0: i32, %arg1: memref<16x32xf32, #tpu.memory_space<vmem>>, %arg2: memref<1x32xf32, #tpu.memory_space<vmem>>, %arg3: memref<1x32xf32, #tpu.memory_space<vmem>>, %arg4: memref<16x32xf32, #tpu.memory_space<vmem>>) attributes {dimension_semantics = [#tpu.dimension_semantics<parallel>], iteration_bounds = array<i64: 1>, scalar_prefetch = 0 : i64, scratch_operands = 0 : i64, tpu.core_type = #tpu.core_type<tc>, window_params = [{transform_indices = @transform_0, window_bounds = array<i64: 16, 32>}, {pipeline_mode = #tpu.pipeline_mode<synchronous>, transform_indices = @transform_1, window_bounds = array<i64: 1, 32>}, {pipeline_mode = #tpu.pipeline_mode<synchronous>, transform_indices = @transform_2, window_bounds = array<i64: 1, 32>}, {transform_indices = @transform_3, window_bounds = array<i64: 16, 32>}]} {
    %0 = tpu.iota {dimensions = array<i32: 0>} : vector<16x32xi32>
    %1 = arith.sitofp %0 : vector<16x32xi32> to vector<16x32xf32>
    %cst = arith.constant 5.000000e-01 : f32
    %2 = vector.broadcast %cst : f32 to vector<16x32xf32>
    %3 = arith.addf %1, %2 : vector<16x32xf32>
    %cst_0 = arith.constant 5.000000e-01 : f32
    %4 = vector.broadcast %cst_0 : f32 to vector<16x32xf32>
    %5 = arith.mulf %3, %4 : vector<16x32xf32>
    %6 = arith.fptosi %5 : vector<16x32xf32> to vector<16x32xi32>
    %c8_i32 = arith.constant 8 : i32
    %7 = arith.muli %arg0, %c8_i32 : i32
    %8 = vector.broadcast %7 : i32 to vector<16x32xi32>
    %9 = arith.addi %6, %8 : vector<16x32xi32>
    %10 = arith.sitofp %9 : vector<16x32xi32> to vector<16x32xf32>
    %c0 = arith.constant 0 : index
    %c0_1 = arith.constant 0 : index
    %11 = vector.load %arg2[%c0, %c0_1] : memref<1x32xf32, #tpu.memory_space<vmem>>, vector<1x32xf32>
    %12 = vector.broadcast %11 : vector<1x32xf32> to vector<16x32xf32>
    %13 = arith.mulf %10, %12 : vector<16x32xf32>
    %c0_2 = arith.constant 0 : index
    %c0_3 = arith.constant 0 : index
    %14 = vector.load %arg3[%c0_2, %c0_3] : memref<1x32xf32, #tpu.memory_space<vmem>>, vector<1x32xf32>
    %15 = vector.broadcast %14 : vector<1x32xf32> to vector<16x32xf32>
    %16 = arith.addf %13, %15 : vector<16x32xf32>
    %c0_4 = arith.constant 0 : index
    %c0_5 = arith.constant 0 : index
    %17 = vector.load %arg1[%c0_4, %c0_5] : memref<16x32xf32, #tpu.memory_space<vmem>>, vector<16x32xf32>
    %18 = math.sin %16 : vector<16x32xf32>
    %19 = arith.addf %17, %18 : vector<16x32xf32>
    %c0_6 = arith.constant 0 : index
    %c0_7 = arith.constant 0 : index
    %20 = vector.load %arg4[%c0_6, %c0_7] : memref<16x32xf32, #tpu.memory_space<vmem>>, vector<16x32xf32>
    tpu.vector_store %arg4[%c0_6, %c0_7], %19 {strides = array<i32>} : memref<16x32xf32, #tpu.memory_space<vmem>>, vector<16x32xf32>,
    return
  }
  func.func @transform_0(%arg0: i32) -> (i32, i32) {
    %c0_i32 = arith.constant 0 : i32
    %c0_i32_0 = arith.constant 0 : i32
    return %arg0, %c0_i32 : i32, i32
  }
  func.func @transform_1(%arg0: i32) -> (i32, i32) {
    %c0_i32 = arith.constant 0 : i32
    %c0_i32_0 = arith.constant 0 : i32
    %c0_i32_1 = arith.constant 0 : i32
    return %c0_i32, %c0_i32_0 : i32, i32
  }
  func.func @transform_2(%arg0: i32) -> (i32, i32) {
    %c0_i32 = arith.constant 0 : i32
    %c0_i32_0 = arith.constant 0 : i32
    %c0_i32_1 = arith.constant 0 : i32
    return %c0_i32, %c0_i32_0 : i32, i32
  }
  func.func @transform_3(%arg0: i32) -> (i32, i32) {
    %c0_i32 = arith.constant 0 : i32
    %c0_i32_0 = arith.constant 0 : i32
    return %arg0, %c0_i32 : i32, i32
  }
}

module attributes {stable_mosaic.version = 11 : i64} {
  func.func @_pe_streamed_kernel(%arg0: i32, %arg1: memref<8x2x32xf32, #tpu.memory_space<vmem>>, %arg2: memref<8x1x32xf32, #tpu.memory_space<vmem>>, %arg3: memref<8x2x32xf32, #tpu.memory_space<vmem>>) attributes {dimension_semantics = [#tpu.dimension_semantics<parallel>], iteration_bounds = array<i64: 1>, scalar_prefetch = 0 : i64, scratch_operands = 0 : i64, tpu.core_type = #tpu.core_type<tc>, window_params = [{transform_indices = @transform_0, window_bounds = array<i64: 8, 2, 32>}, {transform_indices = @transform_1, window_bounds = array<i64: 8, 1, 32>}, {transform_indices = @transform_2, window_bounds = array<i64: 8, 2, 32>}]} {
    %c0 = arith.constant 0 : index
    %c0_0 = arith.constant 0 : index
    %c0_1 = arith.constant 0 : index
    %0 = vector.load %arg1[%c0, %c0_0, %c0_1] : memref<8x2x32xf32, #tpu.memory_space<vmem>>, vector<8x2x32xf32>
    %c0_2 = arith.constant 0 : index
    %c0_3 = arith.constant 0 : index
    %c0_4 = arith.constant 0 : index
    %1 = vector.load %arg2[%c0_2, %c0_3, %c0_4] : memref<8x1x32xf32, #tpu.memory_space<vmem>>, vector<8x1x32xf32>
    %2 = vector.broadcast %1 : vector<8x1x32xf32> to vector<8x2x32xf32>
    %3 = arith.addf %0, %2 : vector<8x2x32xf32>
    %c0_5 = arith.constant 0 : index
    %c0_6 = arith.constant 0 : index
    %c0_7 = arith.constant 0 : index
    %4 = vector.load %arg3[%c0_5, %c0_6, %c0_7] : memref<8x2x32xf32, #tpu.memory_space<vmem>>, vector<8x2x32xf32>
    tpu.vector_store %arg3[%c0_5, %c0_6, %c0_7], %3 {strides = array<i32>} : memref<8x2x32xf32, #tpu.memory_space<vmem>>, vector<8x2x32xf32>,
    return
  }
  func.func @transform_0(%arg0: i32) -> (i32, i32, i32) {
    %c0_i32 = arith.constant 0 : i32
    %c0_i32_0 = arith.constant 0 : i32
    %c0_i32_1 = arith.constant 0 : i32
    return %arg0, %c0_i32, %c0_i32_0 : i32, i32, i32
  }
  func.func @transform_1(%arg0: i32) -> (i32, i32, i32) {
    %c0_i32 = arith.constant 0 : i32
    %c0_i32_0 = arith.constant 0 : i32
    %c0_i32_1 = arith.constant 0 : i32
    return %arg0, %c0_i32, %c0_i32_0 : i32, i32, i32
  }
  func.func @transform_2(%arg0: i32) -> (i32, i32, i32) {
    %c0_i32 = arith.constant 0 : i32
    %c0_i32_0 = arith.constant 0 : i32
    %c0_i32_1 = arith.constant 0 : i32
    return %arg0, %c0_i32, %c0_i32_0 : i32, i32, i32
  }
}

</mosaic_0001>

<llo_original>
// kernel: tpu_custom_call.1
$region0: #{tpu_custom_call.1}
  #allocation0 [shape = 'u32[]', space=smem, size = 0x4, offset = 0x4, fixed_abs, tag = 'smem constant byte address 0x4 - core index']
  #allocation1 [shape = 'u32[144,128]{1,0:T(1,128)}', space=vmem, size = 0x12000, scoped, tag = 'internal scratch']
  %s0 = inlined_call_operand.hbm [shape: f32[16,32], index: 0, kind: input, shape index: {}]
  %s1 = inlined_call_operand.vmem [shape: f32[1,32], index: 1, kind: input, shape index: {}]
  %s2 = inlined_call_operand.vmem [shape: f32[1,32], index: 2, kind: input, shape index: {}]
  %s3 = inlined_call_operand.hbm [shape: f32[16,32], index: 3, kind: output, shape index: {}]
  %s4 = sld [smem:[#allocation0]]
  $region26: #{tpu_custom_call.1} parent=0
    _
  %s6 = ssub.s32 1, %s4
  %s7 = scalar_select 0, %s6, %s4
  $region1: #{tpu_custom_call.1} parent=0
    #allocation2 [shape = 'u8[8192]{0}', space=vmem, size = 0x2000, scoped, tag = 'input window, operand 0, single buffered']
    #allocation3 [shape = 's32[1]{0}', space=sflag, size = 0x4, scoped, tag = 'scoped memory for tpu_custom_call.1']
    #allocation4 [shape = 's32[1]{0}', space=sflag, size = 0x4, scoped, tag = 'scoped memory for tpu_custom_call.1']
    #allocation5 [shape = 'u8[8192]{0}', space=vmem, size = 0x2000, scoped, tag = 'output window, operand 0, single buffered']
    %8 = vsyncpa [#allocation3], 0
    %9 = vsyncpa [#allocation4], 0
    // Predicated region
    $region2: #{tpu_custom_call.1} parent=1 // pred_check
      _
    $region3: #{tpu_custom_call.1} parent=1 // pred_check_branch
      %11 = sbr.rel (0) target = $region5
    $region4: #{tpu_custom_call.1} parent=1 // pred_region
      %s13 = ssub.s32 256, 256
      %14 = vsyncadd [#allocation3], %s13
      %s15 = sshll.u32 [#allocation2], 4
      %s16 = int_to_ptr.vmem [resolvable:$true] %s15
      %21 = dma.hbm_to_vmem [thread:$0]  %s0, 256, %s16, [#allocation3], 128, 128, 8
    $region5: #{tpu_custom_call.1} parent=1 // pred_fallthru
      _
    // Predicated region
    $region6: #{tpu_custom_call.1} parent=1 // pred_check
      _
    $region7: #{tpu_custom_call.1} parent=1 // pred_check_branch
      %23 = sbr.rel (0) target = $region9
    $region8: #{tpu_custom_call.1} parent=1 // pred_region
      _
    $region9: #{tpu_custom_call.1} parent=1 // pred_fallthru
      _
    // Predicated region
    $region10: #{tpu_custom_call.1} parent=1 // pred_check
      _
    $region11: #{tpu_custom_call.1} parent=1 // pred_check_branch
      %25 = sbr.rel (0) target = $region13
    $region12: #{tpu_custom_call.1} parent=1 // pred_region
      _
    $region13: #{tpu_custom_call.1} parent=1 // pred_fallthru
      _
    // Predicated region
    $region14: #{tpu_custom_call.1} parent=1 // pred_check
      _
    $region15: #{tpu_custom_call.1} parent=1 // pred_check_branch
      %27 = sbr.rel (0) target = $region17
    $region16: #{tpu_custom_call.1} parent=1 // pred_region
      %28 = dma.done [#allocation3], 256
    $region17: #{tpu_custom_call.1} parent=1 // pred_fallthru
      _
    %v29 = vlaneseq
    %v30 = vshrl.u32 %v29, 7
    %v31 = vadd.s32 %v30, 8
    %v32 = vcvt.s32.f32 %v30
    %v33 = vcvt.s32.f32 %v31
    %v34 = vadd.f32 %v32, 0.5
    %v35 = vadd.f32 %v33, 0.5
    %v36 = vmul.f32 %v34, 0.5
    %v37 = vmul.f32 %v35, 0.5
    %v38 = vcvt.f32.s32.to.zero.pseudo %v36
    %v39 = vcvt.f32.s32.to.zero.pseudo %v37
    %s40 = smul.u32 0, 8
    %v41 = vstv %s40
    %v42 = vadd.s32 %v38, %v41
    %v43 = vadd.s32 %v39, %v41
    %v44 = vcvt.s32.f32 %v42
    %v45 = vcvt.s32.f32 %v43
    %v46 = vld [vmem:[%s1] sm:$0x1]
    %v48 = vlaneseq
    %v49 = vshrl.u32 %v48, 7
    %v50 = vsub.s32 0, %v49
    %v51 = vrot.slane %v46, %v50
    %v53 = vmul.f32 %v44, %v51
    %v54 = vmul.f32 %v45, %v51
    %v55 = vld [vmem:[%s2] sm:$0x1]
    %v57 = vlaneseq
    %v58 = vshrl.u32 %v57, 7
    %v59 = vsub.s32 0, %v58
    %v60 = vrot.slane %v55, %v59
    %v62 = vadd.f32 %v53, %v60
    %v63 = vadd.f32 %v54, %v60
    %v64 = vld [vmem:[#allocation2] sm:$0xff]
    %v65 = vld [vmem:[#allocation2 + $0x8] sm:$0xff]
    %v66 = vand.u32 2147483647, %v62
    %vm67 = vcmp.le.f32.partialorder %v66, 0.7853982
    %vm68 = vcmp.lt.s32.totalorder %v62, 0
    %v69 = vand.u32 %v62, 2139095040
    %v70 = vshrl.u32 %v69, 23
    %v71 = vsub.s32 %v70, 127
    %v72 = vand.u32 2147483647, %v62
    %v73 = vand.u32 %v72, 8388607
    %v74 = vor.u32 %v73, 8388608
    %v75 = vsub.s32 0, %v74
    %v76 = vadd.s32 %v71, 1
    %vm77 = vcmp.gt.s32.totalorder %v76, 0
    %v78 = vsel %vm77, %v76, 0
    %v79 = vshrl.u32 %v78, 5
    %v80 = vand.u32 %v78, 31
    %v81 = vsub.s32 32, %v80
    %v82 = vshrl.u32 683565275, %v81
    %v83 = vshll.u32 683565275, %v80
    %v84 = vshrl.u32 2475754826, %v81
    %v85 = vor.u32 %v83, %v84
    %v86 = vshll.u32 2475754826, %v80
    %v87 = vshrl.u32 2131351028, %v81
    %v88 = vor.u32 %v86, %v87
    %v89 = vshll.u32 2131351028, %v80
    %v90 = vshrl.u32 2102212464, %v81
    %v91 = vor.u32 %v89, %v90
    %v92 = vshll.u32 2102212464, %v80
    %v93 = vshrl.u32 920167782, %v81
    %v94 = vor.u32 %v92, %v93
    %v95 = vshll.u32 920167782, %v80
    %v96 = vshrl.u32 1326507024, %v81
    %v97 = vor.u32 %v95, %v96
    %vm98 = vcmp.lt.s32.totalorder %v79, 1
    %vm99 = vcmp.lt.s32.totalorder %v79, 2
    %vm100 = vcmp.lt.s32.totalorder %v79, 3
    %vm101 = vcmp.lt.s32.totalorder %v79, 4
    %v102 = vsel %vm98, %v82, %v85
    %v103 = vsel %vm101, %v91, 2102212464
    %v104 = vsel %vm100, %v88, %v103
    %v105 = vsel %vm99, %v102, %v104
    %v106 = vsel %vm98, %v85, %v88
    %v107 = vsel %vm101, %v94, 920167782
    %v108 = vsel %vm100, %v91, %v107
    %v109 = vsel %vm99, %v106, %v108
    %v110 = vsel %vm98, %v88, %v91
    %v111 = vsel %vm101, %v97, 1326507024
    %v112 = vsel %vm100, %v94, %v111
    %v113 = vsel %vm99, %v110, %v112
    %v114 = vshll.u32 %v74, 8
    %v115 = vmul.u32.u64.compose %v114, %v113
    %v116 = vextract.low.u32 %v115
    %v117 = vextract.high.u32 %v115
    %v118 = vmul.u32.u64.compose %v114, %v109
    %v119 = vextract.low.u32 %v118
    %v120 = vextract.high.u32 %v118
    %v121 = vmul.u32 %v114, %v105
    %v122 = vadd.s32 %v117, %v119
    %vm123 = vc.u32 %v117, %v119
    %v124 = vadd.s32 %v120, 1
    %v125 = vsel %vm123, %v124, %v120
    %v126 = vadd.s32 %v121, %v125
    %v127 = vadd.s32 %v126, 536870912
    %v128 = vshrl.u32 %v127, 30
    %v129 = vshll.u32 %v128, 30
    %v130 = vsub.s32 %v126, %v129
    %vm131 = vcmp.lt.s32.totalorder %v130, 0
    %v132 = vsub.s32 0, %v130
    %v133 = vsel %vm131, %v132, %v130
    %v134 = vclz %v133
    %v135 = vsub.s32 %v134, 2
    %vm136 = vcmp.gt.s32.totalorder 0, %v135
    %v137 = vsel %vm136, 0, %v135
    %v138 = vsub.s32 32, %v137
    %v139 = vshll.u32 %v130, %v137
    %v140 = vshrl.u32 %v122, %v138
    %v141 = vor.u32 %v139, %v140
    %v142 = vsub.s32 4294967266, %v137
    %v143 = vadd.s32 %v142, 127
    %v144 = vshll.u32 %v143, 23
    %v145 = vor.u32 4788187, %v144
    %v146 = vand.u32 2147483647, %v145
    %v148 = vcvt.s32.f32 %v141
    %v149 = vmul.f32 %v148, %v146
    %v150 = vxor.u32 %v149, 2147483648
    %v151 = vsel %vm68, %v150, %v149
    %v152 = vsub.s32 4, %v128
    %v153 = vsel %vm68, %v152, %v128
    %v154 = vsel %vm67, %v62, %v151
    %v155 = vsel %vm67, 0, %v153
    %v156 = vcosq.f32.pop %v154
    %v157 = vsinq.f32.pop %v154
    %vm158 = vweird.f32 %v62
    %v159 = vadd.s32 %v155, 3
    %v160 = vand.u32 %v159, 3
    %vm161 = vcmp.lt.s32.totalorder %v160, 2
    %vm162 = vcmp.eq.s32.totalorder %v160, 0
    %v163 = vxor.u32 %v157, 2147483648
    %v164 = vsel %vm162, %v156, %v163
    %vm165 = vcmp.eq.s32.totalorder %v160, 2
    %v166 = vxor.u32 %v156, 2147483648
    %v167 = vsel %vm165, %v166, %v157
    %v168 = vsel %vm161, %v164, %v167
    %v169 = vsel %vm158, nan, %v168
    %v170 = vand.u32 2147483647, %v63
    %vm171 = vcmp.le.f32.partialorder %v170, 0.7853982
    %vm172 = vcmp.lt.s32.totalorder %v63, 0
    %v173 = vand.u32 %v63, 2139095040
    %v174 = vshrl.u32 %v173, 23
    %v175 = vsub.s32 %v174, 127
    %v176 = vand.u32 2147483647, %v63
    %v177 = vand.u32 %v176, 8388607
    %v178 = vor.u32 %v177, 8388608
    %v179 = vsub.s32 0, %v178
    %v180 = vadd.s32 %v175, 1
    %vm181 = vcmp.gt.s32.totalorder %v180, 0
    %v182 = vsel %vm181, %v180, 0
    %v183 = vshrl.u32 %v182, 5
    %v184 = vand.u32 %v182, 31
    %v185 = vsub.s32 32, %v184
    %v186 = vshrl.u32 683565275, %v185
    %v187 = vshll.u32 683565275, %v184
    %v188 = vshrl.u32 2475754826, %v185
    %v189 = vor.u32 %v187, %v188
    %v190 = vshll.u32 2475754826, %v184
    %v191 = vshrl.u32 2131351028, %v185
    %v192 = vor.u32 %v190, %v191
    %v193 = vshll.u32 2131351028, %v184
    %v194 = vshrl.u32 2102212464, %v185
    %v195 = vor.u32 %v193, %v194
    %v196 = vshll.u32 2102212464, %v184
    %v197 = vshrl.u32 920167782, %v185
    %v198 = vor.u32 %v196, %v197
    %v199 = vshll.u32 920167782, %v184
    %v200 = vshrl.u32 1326507024, %v185
    %v201 = vor.u32 %v199, %v200
    %vm202 = vcmp.lt.s32.totalorder %v183, 1
    %vm203 = vcmp.lt.s32.totalorder %v183, 2
    %vm204 = vcmp.lt.s32.totalorder %v183, 3
    %vm205 = vcmp.lt.s32.totalorder %v183, 4
    %v206 = vsel %vm202, %v186, %v189
    %v207 = vsel %vm205, %v195, 2102212464
    %v208 = vsel %vm204, %v192, %v207
    %v209 = vsel %vm203, %v206, %v208
    %v210 = vsel %vm202, %v189, %v192
    %v211 = vsel %vm205, %v198, 920167782
    %v212 = vsel %vm204, %v195, %v211
    %v213 = vsel %vm203, %v210, %v212
    %v214 = vsel %vm202, %v192, %v195
    %v215 = vsel %vm205, %v201, 1326507024
    %v216 = vsel %vm204, %v198, %v215
    %v217 = vsel %vm203, %v214, %v216
    %v218 = vshll.u32 %v178, 8
    %v219 = vmul.u32.u64.compose %v218, %v217
    %v220 = vextract.low.u32 %v219
    %v221 = vextract.high.u32 %v219
    %v222 = vmul.u32.u64.compose %v218, %v213
    %v223 = vextract.low.u32 %v222
    %v224 = vextract.high.u32 %v222
    %v225 = vmul.u32 %v218, %v209
    %v226 = vadd.s32 %v221, %v223
    %vm227 = vc.u32 %v221, %v223
    %v228 = vadd.s32 %v224, 1
    %v229 = vsel %vm227, %v228, %v224
    %v230 = vadd.s32 %v225, %v229
    %v231 = vadd.s32 %v230, 536870912
    %v232 = vshrl.u32 %v231, 30
    %v233 = vshll.u32 %v232, 30
    %v234 = vsub.s32 %v230, %v233
    %vm235 = vcmp.lt.s32.totalorder %v234, 0
    %v236 = vsub.s32 0, %v234
    %v237 = vsel %vm235, %v236, %v234
    %v238 = vclz %v237
    %v239 = vsub.s32 %v238, 2
    %vm240 = vcmp.gt.s32.totalorder 0, %v239
    %v241 = vsel %vm240, 0, %v239
    %v242 = vsub.s32 32, %v241
    %v243 = vshll.u32 %v234, %v241
    %v244 = vshrl.u32 %v226, %v242
    %v245 = vor.u32 %v243, %v244
    %v246 = vsub.s32 4294967266, %v241
    %v247 = vadd.s32 %v246, 127
    %v248 = vshll.u32 %v247, 23
    %v249 = vor.u32 4788187, %v248
    %v250 = vand.u32 2147483647, %v249
    %v252 = vcvt.s32.f32 %v245
    %v253 = vmul.f32 %v252, %v250
    %v254 = vxor.u32 %v253, 2147483648
    %v255 = vsel %vm172, %v254, %v253
    %v256 = vsub.s32 4, %v232
    %v257 = vsel %vm172, %v256, %v232
    %v258 = vsel %vm171, %v63, %v255
    %v259 = vsel %vm171, 0, %v257
    %v260 = vcosq.f32.pop %v258
    %v261 = vsinq.f32.pop %v258
    %vm262 = vweird.f32 %v63
    %v263 = vadd.s32 %v259, 3
    %v264 = vand.u32 %v263, 3
    %vm265 = vcmp.lt.s32.totalorder %v264, 2
    %vm266 = vcmp.eq.s32.totalorder %v264, 0
    %v267 = vxor.u32 %v261, 2147483648
    %v268 = vsel %vm266, %v260, %v267
    %vm269 = vcmp.eq.s32.totalorder %v264, 2
    %v270 = vxor.u32 %v260, 2147483648
    %v271 = vsel %vm269, %v270, %v261
    %v272 = vsel %vm265, %v268, %v271
    %v273 = vsel %vm262, nan, %v272
    %v274 = vadd.f32 %v64, %v169
    %v275 = vadd.f32 %v65, %v273
    %vm276 = vcmask 261120
    %277 = vst.msk [vmem:[#allocation5] sm:$0xff] %vm276, %v274
    %278 = vst.msk [vmem:[#allocation5 + $0x8] sm:$0xff] %vm276, %v275
    // Predicated region
    $region18: #{tpu_custom_call.1} parent=1 // pred_check
      _
    $region19: #{tpu_custom_call.1} parent=1 // pred_check_branch
      %280 = sbr.rel (0) target = $region21
    $region20: #{tpu_custom_call.1} parent=1 // pred_region
      %s282 = ssub.s32 256, 256
      %283 = vsyncadd [#allocation4], %s282
      %s284 = sshll.u32 [#allocation5], 4
      %s285 = int_to_ptr.vmem [resolvable:$true] %s284
      %290 = dma.vmem_to_hbm [thread:$0]  %s285, 256, %s3, [#allocation4], 128, 128, 8
    $region21: #{tpu_custom_call.1} parent=1 // pred_fallthru
      _
    // Predicated region
    $region22: #{tpu_custom_call.1} parent=1 // pred_check
      _
    $region23: #{tpu_custom_call.1} parent=1 // pred_check_branch
      %292 = sbr.rel (0) target = $region25
    $region24: #{tpu_custom_call.1} parent=1 // pred_region
      %293 = dma.done [#allocation4], 256
    $region25: #{tpu_custom_call.1} parent=1 // pred_fallthru
      _
    %294 = vsyncpa [#allocation3], 1
    %295 = vsyncpa [#allocation4], 1

// kernel: tpu_custom_call.1
$region0: #{tpu_custom_call.1}
  #allocation0 [shape = 'u32[]', space=smem, size = 0x4, offset = 0x4, fixed_abs, tag = 'smem constant byte address 0x4 - core index']
  #allocation1 [shape = 'u32[144,128]{1,0:T(1,128)}', space=vmem, size = 0x12000, scoped, tag = 'internal scratch']
  %s0 = inlined_call_operand.hbm [shape: f32[8,2,32], index: 0, kind: input, shape index: {}]
  %s1 = inlined_call_operand.hbm [shape: f32[30,1,32], index: 1, kind: input, shape index: {}]
  %s2 = inlined_call_operand.hbm [shape: f32[8,2,32], index: 2, kind: output, shape index: {}]
  %s3 = sld [smem:[#allocation0]]
  $region26: #{tpu_custom_call.1} parent=0
    _
  %s5 = ssub.s32 1, %s3
  %s6 = scalar_select 0, %s5, %s3
  $region1: #{tpu_custom_call.1} parent=0
    #allocation2 [shape = 'u8[8192]{0}', space=vmem, size = 0x2000, scoped, tag = 'input window, operand 0, single buffered']
    #allocation3 [shape = 's32[1]{0}', space=sflag, size = 0x4, scoped, tag = 'scoped memory for tpu_custom_call.1']
    #allocation4 [shape = 's32[1]{0}', space=sflag, size = 0x4, scoped, tag = 'scoped memory for tpu_custom_call.1']
    #allocation5 [shape = 'u8[4096]{0}', space=vmem, size = 0x1000, scoped, tag = 'input window, operand 1, single buffered']
    #allocation6 [shape = 's32[1]{0}', space=sflag, size = 0x4, scoped, tag = 'scoped memory for tpu_custom_call.1']
    #allocation7 [shape = 'u8[8192]{0}', space=vmem, size = 0x2000, scoped, tag = 'output window, operand 0, single buffered']
    %7 = vsyncpa [#allocation3], 0
    %8 = vsyncpa [#allocation6], 0
    %9 = vsyncpa [#allocation4], 0
    // Predicated region
    $region2: #{tpu_custom_call.1} parent=1 // pred_check
      _
    $region3: #{tpu_custom_call.1} parent=1 // pred_check_branch
      %11 = sbr.rel (0) target = $region5
    $region4: #{tpu_custom_call.1} parent=1 // pred_region
      %s13 = ssub.s32 256, 256
      %14 = vsyncadd [#allocation3], %s13
      %s15 = sshll.u32 [#allocation2], 4
      %s16 = int_to_ptr.vmem [resolvable:$true] %s15
      %21 = dma.hbm_to_vmem [thread:$0]  %s0, 256, %s16, [#allocation3], 32, 32, 2
    $region5: #{tpu_custom_call.1} parent=1 // pred_fallthru
      _
    // Predicated region
    $region6: #{tpu_custom_call.1} parent=1 // pred_check
      _
    $region7: #{tpu_custom_call.1} parent=1 // pred_check_branch
      %23 = sbr.rel (0) target = $region9
    $region8: #{tpu_custom_call.1} parent=1 // pred_region
      %s25 = ssub.s32 128, 128
      %26 = vsyncadd [#allocation6], %s25
      %s27 = sshll.u32 [#allocation5], 4
      %s28 = int_to_ptr.vmem [resolvable:$true] %s27
      %33 = dma.hbm_to_vmem [thread:$0]  %s1, 128, %s28, [#allocation6], 16, 16, 1
    $region9: #{tpu_custom_call.1} parent=1 // pred_fallthru
      _
    // Predicated region
    $region10: #{tpu_custom_call.1} parent=1 // pred_check
      _
    $region11: #{tpu_custom_call.1} parent=1 // pred_check_branch
      %35 = sbr.rel (0) target = $region13
    $region12: #{tpu_custom_call.1} parent=1 // pred_region
      %36 = dma.done [#allocation3], 256
    $region13: #{tpu_custom_call.1} parent=1 // pred_fallthru
      _
    // Predicated region
    $region14: #{tpu_custom_call.1} parent=1 // pred_check
      _
    $region15: #{tpu_custom_call.1} parent=1 // pred_check_branch
      %38 = sbr.rel (0) target = $region17
    $region16: #{tpu_custom_call.1} parent=1 // pred_region
      %39 = dma.done [#allocation6], 128
    $region17: #{tpu_custom_call.1} parent=1 // pred_fallthru
      _
    %v40 = vld [vmem:[#allocation2] sm:$0x3]
    %v41 = vld [vmem:[#allocation2 + $0x2] sm:$0x3]
    %v42 = vld [vmem:[#allocation2 + $0x4] sm:$0x3]
    %v43 = vld [vmem:[#allocation2 + $0x6] sm:$0x3]
    %v44 = vld [vmem:[#allocation2 + $0x8] sm:$0x3]
    %v45 = vld [vmem:[#allocation2 + $0xa] sm:$0x3]
    %v46 = vld [vmem:[#allocation2 + $0xc] sm:$0x3]
    %v47 = vld [vmem:[#allocation2 + $0xe] sm:$0x3]
    %v48 = vld [vmem:[#allocation5] sm:$0x1]
    %v49 = vld [vmem:[#allocation5 + $0x1] sm:$0x1]
    %v50 = vld [vmem:[#allocation5 + $0x2] sm:$0x1]
    %v51 = vld [vmem:[#allocation5 + $0x3] sm:$0x1]
    %v52 = vld [vmem:[#allocation5 + $0x4] sm:$0x1]
    %v53 = vld [vmem:[#allocation5 + $0x5] sm:$0x1]
    %v54 = vld [vmem:[#allocation5 + $0x6] sm:$0x1]
    %v55 = vld [vmem:[#allocation5 + $0x7] sm:$0x1]
    %v64 = vlaneseq
    %v65 = vshrl.u32 %v64, 7
    %v66 = vsub.s32 0, %v65
    %v67 = vrot.slane %v48, %v66
    %v68 = vlaneseq
    %v69 = vshrl.u32 %v68, 7
    %v70 = vsub.s32 0, %v69
    %v71 = vrot.slane %v49, %v70
    %v72 = vlaneseq
    %v73 = vshrl.u32 %v72, 7
    %v74 = vsub.s32 0, %v73
    %v75 = vrot.slane %v50, %v74
    %v76 = vlaneseq
    %v77 = vshrl.u32 %v76, 7
    %v78 = vsub.s32 0, %v77
    %v79 = vrot.slane %v51, %v78
    %v80 = vlaneseq
    %v81 = vshrl.u32 %v80, 7
    %v82 = vsub.s32 0, %v81
    %v83 = vrot.slane %v52, %v82
    %v84 = vlaneseq
    %v85 = vshrl.u32 %v84, 7
    %v86 = vsub.s32 0, %v85
    %v87 = vrot.slane %v53, %v86
    %v88 = vlaneseq
    %v89 = vshrl.u32 %v88, 7
    %v90 = vsub.s32 0, %v89
    %v91 = vrot.slane %v54, %v90
    %v92 = vlaneseq
    %v93 = vshrl.u32 %v92, 7
    %v94 = vsub.s32 0, %v93
    %v95 = vrot.slane %v55, %v94
    %v104 = vadd.f32 %v40, %v67
    %v105 = vadd.f32 %v41, %v71
    %v106 = vadd.f32 %v42, %v75
    %v107 = vadd.f32 %v43, %v79
    %v108 = vadd.f32 %v44, %v83
    %v109 = vadd.f32 %v45, %v87
    %v110 = vadd.f32 %v46, %v91
    %v111 = vadd.f32 %v47, %v95
    %vm112 = vcmask 254976
    %113 = vst.msk [vmem:[#allocation7] sm:$0x3] %vm112, %v104
    %114 = vst.msk [vmem:[#allocation7 + $0x2] sm:$0x3] %vm112, %v105
    %115 = vst.msk [vmem:[#allocation7 + $0x4] sm:$0x3] %vm112, %v106
    %116 = vst.msk [vmem:[#allocation7 + $0x6] sm:$0x3] %vm112, %v107
    %117 = vst.msk [vmem:[#allocation7 + $0x8] sm:$0x3] %vm112, %v108
    %118 = vst.msk [vmem:[#allocation7 + $0xa] sm:$0x3] %vm112, %v109
    %119 = vst.msk [vmem:[#allocation7 + $0xc] sm:$0x3] %vm112, %v110
    %120 = vst.msk [vmem:[#allocation7 + $0xe] sm:$0x3] %vm112, %v111
    // Predicated region
    $region18: #{tpu_custom_call.1} parent=1 // pred_check
      _
    $region19: #{tpu_custom_call.1} parent=1 // pred_check_branch
      %122 = sbr.rel (0) target = $region21
    $region20: #{tpu_custom_call.1} parent=1 // pred_region
      %s124 = ssub.s32 256, 256
      %125 = vsyncadd [#allocation4], %s124
      %s126 = sshll.u32 [#allocation7], 4
      %s127 = int_to_ptr.vmem [resolvable:$true] %s126
      %132 = dma.vmem_to_hbm [thread:$0]  %s127, 256, %s2, [#allocation4], 32, 32, 2
    $region21: #{tpu_custom_call.1} parent=1 // pred_fallthru
      _
    // Predicated region
    $region22: #{tpu_custom_call.1} parent=1 // pred_check
      _
    $region23: #{tpu_custom_call.1} parent=1 // pred_check_branch
      %134 = sbr.rel (0) target = $region25
    $region24: #{tpu_custom_call.1} parent=1 // pred_region
      %135 = dma.done [#allocation4], 256
    $region25: #{tpu_custom_call.1} parent=1 // pred_fallthru
      _
    %136 = vsyncpa [#allocation3], 1
    %137 = vsyncpa [#allocation6], 1
    %138 = vsyncpa [#allocation4], 1

</llo_original>
